<compile_context>
chip_gen: v7x
topology: tpu7x:2x2x1
jax: 0.10.0
libtpu: 0.0.40
codegen_flags: <defaults>
</compile_context>

<pallas_src>
import functools

import jax
import jax.numpy as jnp
from jax.experimental import pallas as pl
from jax.experimental.pallas import tpu as pltpu


def _encoder_train_kernel(x_ref, m_ref, w_ref, b_ref, o_ref, *, scale):
    """Fused dropout-mask -> bf16 matmul -> scale + bias -> ReLU."""
    # Mask only (0/1) before the MXU; defer the 1/(1-p) scale to post-matmul.
    x = (x_ref[...] * m_ref[...]).astype(jnp.bfloat16)
    h = jnp.dot(x, w_ref[...], preferred_element_type=jnp.float32)       # MXU
    h = h * jnp.float32(scale) + b_ref[...]                              # VPU
    o_ref[...] = jnp.maximum(h, 0.0).astype(o_ref.dtype)                 # ReLU


def _encoder_eval_kernel(x_ref, w_ref, b_ref, o_ref):
    """Eval mode: dropout is identity -> bf16 matmul -> bias -> ReLU."""
    h = jnp.dot(x_ref[...].astype(jnp.bfloat16), w_ref[...],
                preferred_element_type=jnp.float32)
    o_ref[...] = jnp.maximum(h + b_ref[...], 0.0).astype(o_ref.dtype)


def static_features_encoder(x, w, b, *, drop_p=0.5, training=True,
                            rng_key=None, tile_b=128):
    """x: (B, Fin) f32, w: (Fin, Fout) f32, b: (1, Fout) f32 -> (B, Fout) f32."""
    B, Fin = x.shape
    Fout = w.shape[1]
    out_dtype = x.dtype

    w_bf16 = w.astype(jnp.bfloat16)              # MXU-native, halves weight DMA
    b2d = jnp.reshape(b, (1, Fout)).astype(jnp.float32)

    # Pre-generate the dropout keep-mask (interpreter-safe; see TODO above).
    keep = None
    if training and drop_p > 0.0:
        if rng_key is None:
            rng_key = jax.random.PRNGKey(0)
        keep = jax.random.bernoulli(rng_key, 1.0 - drop_p, (B, Fin)).astype(x.dtype)

    # Pad batch to a multiple of the row tile (kept static under jit).
    tile_b = min(tile_b, max(8, B))
    pad = (-B) % tile_b
    if pad:
        x = jnp.pad(x, ((0, pad), (0, 0)))
        if keep is not None:
            keep = jnp.pad(keep, ((0, pad), (0, 0)))
    Bp = B + pad
    grid = (pl.cdiv(Bp, tile_b),)

    x_spec = pl.BlockSpec((tile_b, Fin), lambda i: (i, 0))
    m_spec = pl.BlockSpec((tile_b, Fin), lambda i: (i, 0))
    w_spec = pl.BlockSpec((Fin, Fout), lambda i: (0, 0))      # VMEM-resident
    b_spec = pl.BlockSpec((1, Fout), lambda i: (0, 0))        # VMEM-resident
    o_spec = pl.BlockSpec((tile_b, Fout), lambda i: (i, 0))

    cparams = pltpu.CompilerParams(dimension_semantics=("parallel",))

    if keep is not None:
        kernel = functools.partial(_encoder_train_kernel,
                                   scale=float(1.0 / (1.0 - drop_p)))
        out = pl.pallas_call(
            kernel,
            out_shape=jax.ShapeDtypeStruct((Bp, Fout), out_dtype),
            grid=grid,
            in_specs=[x_spec, m_spec, w_spec, b_spec],
            out_specs=o_spec,
            compiler_params=cparams,
        )(x, keep, w_bf16, b2d)
    else:
        out = pl.pallas_call(
            _encoder_eval_kernel,
            out_shape=jax.ShapeDtypeStruct((Bp, Fout), out_dtype),
            grid=grid,
            in_specs=[x_spec, w_spec, b_spec],
            out_specs=o_spec,
            compiler_params=cparams,
        )(x, w_bf16, b2d)

    return out[:B]


if __name__ == "__main__":
    # Shapes consistent with the module: (batch, in_features) -> (batch, out_features).
    BATCH, IN_FEATURES, OUT_FEATURES = 256, 32, 128
    DROP_P = 0.5
    TILE_B = 128

    key = jax.random.PRNGKey(0)
    kx, kw, kb, kd = jax.random.split(key, 4)
    x = jax.random.normal(kx, (BATCH, IN_FEATURES), jnp.float32)
    # Linear weight stored as (in, out) for the in-kernel matmul.
    w = jax.random.normal(kw, (IN_FEATURES, OUT_FEATURES), jnp.float32) \
        / jnp.sqrt(float(IN_FEATURES))
    b = 0.01 * jax.random.normal(kb, (1, OUT_FEATURES), jnp.float32)

    fwd_train = jax.jit(functools.partial(static_features_encoder,
                                          drop_p=DROP_P, training=True,
                                          tile_b=TILE_B))
    fwd_eval = jax.jit(functools.partial(static_features_encoder,
                                         drop_p=DROP_P, training=False,
                                         tile_b=TILE_B))

    # ---- training mode (dropout active) -------------------------------------
    y_train = fwd_train(x, w, b, rng_key=kd)
    jax.block_until_ready(y_train)
    assert y_train.shape == (BATCH, OUT_FEATURES), y_train.shape
    assert bool(jnp.all(jnp.isfinite(y_train)))
    assert bool(jnp.all(y_train >= 0.0))                       # ReLU

    # Reference with the identical mask (same key / same bernoulli draw).
    keep_ref = jax.random.bernoulli(kd, 1.0 - DROP_P,
                                    (BATCH, IN_FEATURES)).astype(x.dtype)
    xm = (x * keep_ref).astype(jnp.bfloat16)
    y_ref_train = jnp.maximum(
        jnp.dot(xm, w.astype(jnp.bfloat16), preferred_element_type=jnp.float32)
        * (1.0 / (1.0 - DROP_P)) + b, 0.0)
    assert bool(jnp.allclose(y_train, y_ref_train, rtol=2e-2, atol=2e-2)), \
        float(jnp.max(jnp.abs(y_train - y_ref_train)))

    # ---- eval mode (dropout = identity) -------------------------------------
    y_eval = fwd_eval(x, w, b)
    jax.block_until_ready(y_eval)
    y_ref_eval = jnp.maximum(
        jnp.dot(x.astype(jnp.bfloat16), w.astype(jnp.bfloat16),
                preferred_element_type=jnp.float32) + b, 0.0)
    assert y_eval.shape == (BATCH, OUT_FEATURES), y_eval.shape
    assert bool(jnp.allclose(y_eval, y_ref_eval, rtol=2e-2, atol=2e-2)), \
        float(jnp.max(jnp.abs(y_eval - y_ref_eval)))

    print("KERNEL_OK")
</pallas_src>

<mosaic_0001>
module attributes {stable_mosaic.version = 11 : i64} {
  func.func @_encoder_train_kernel(%arg0: i32, %arg1: memref<128x32xf32, #tpu.memory_space<vmem>>, %arg2: memref<128x32xf32, #tpu.memory_space<vmem>>, %arg3: memref<32x128xbf16, #tpu.memory_space<vmem>>, %arg4: memref<1x128xf32, #tpu.memory_space<vmem>>, %arg5: memref<128x128xf32, #tpu.memory_space<vmem>>) attributes {dimension_semantics = [#tpu.dimension_semantics<parallel>], iteration_bounds = array<i64: 2>, scalar_prefetch = 0 : i64, scratch_operands = 0 : i64, tpu.core_type = #tpu.core_type<tc>, window_params = [{transform_indices = @transform_0, window_bounds = array<i64: 128, 32>}, {transform_indices = @transform_1, window_bounds = array<i64: 128, 32>}, {pipeline_mode = #tpu.pipeline_mode<synchronous>, transform_indices = @transform_2, window_bounds = array<i64: 32, 128>}, {pipeline_mode = #tpu.pipeline_mode<synchronous>, transform_indices = @transform_3, window_bounds = array<i64: 1, 128>}, {transform_indices = @transform_4, window_bounds = array<i64: 128, 128>}]} {
    %c0 = arith.constant 0 : index
    %c0_0 = arith.constant 0 : index
    %0 = vector.load %arg1[%c0, %c0_0] : memref<128x32xf32, #tpu.memory_space<vmem>>, vector<128x32xf32>
    %c0_1 = arith.constant 0 : index
    %c0_2 = arith.constant 0 : index
    %1 = vector.load %arg2[%c0_1, %c0_2] : memref<128x32xf32, #tpu.memory_space<vmem>>, vector<128x32xf32>
    %2 = arith.mulf %0, %1 : vector<128x32xf32>
    %3 = arith.truncf %2 : vector<128x32xf32> to vector<128x32xbf16>
    %c0_3 = arith.constant 0 : index
    %c0_4 = arith.constant 0 : index
    %4 = vector.load %arg3[%c0_3, %c0_4] : memref<32x128xbf16, #tpu.memory_space<vmem>>, vector<32x128xbf16>
    %cst = arith.constant dense<0.000000e+00> : vector<128x128xf32>
    %5 = tpu.matmul %3, %4, %cst {dimension_numbers = #tpu.dot_dimension_numbers<[1], [0], [0], [1], [0, 0, 1, 1], [], []>} : vector<128x32xbf16>, vector<32x128xbf16>, vector<128x128xf32> -> vector<128x128xf32>
    %cst_5 = arith.constant 2.000000e+00 : f32
    %6 = vector.broadcast %cst_5 : f32 to vector<128x128xf32>
    %7 = arith.mulf %5, %6 : vector<128x128xf32>
    %c0_6 = arith.constant 0 : index
    %c0_7 = arith.constant 0 : index
    %8 = vector.load %arg4[%c0_6, %c0_7] : memref<1x128xf32, #tpu.memory_space<vmem>>, vector<1x128xf32>
    %9 = vector.broadcast %8 : vector<1x128xf32> to vector<128x128xf32>
    %10 = arith.addf %7, %9 : vector<128x128xf32>
    %cst_8 = arith.constant 0.000000e+00 : f32
    %11 = vector.broadcast %cst_8 : f32 to vector<128x128xf32>
    %12 = arith.maximumf %10, %11 : vector<128x128xf32>
    %c0_9 = arith.constant 0 : index
    %c0_10 = arith.constant 0 : index
    %13 = vector.load %arg5[%c0_9, %c0_10] : memref<128x128xf32, #tpu.memory_space<vmem>>, vector<128x128xf32>
    tpu.vector_store %arg5[%c0_9, %c0_10], %12 {strides = array<i32>} : memref<128x128xf32, #tpu.memory_space<vmem>>, vector<128x128xf32>,
    return
  }
  func.func @transform_0(%arg0: i32) -> (i32, i32) {
    %c0_i32 = arith.constant 0 : i32
    %c0_i32_0 = arith.constant 0 : i32
    return %arg0, %c0_i32 : i32, i32
  }
  func.func @transform_1(%arg0: i32) -> (i32, i32) {
    %c0_i32 = arith.constant 0 : i32
    %c0_i32_0 = arith.constant 0 : i32
    return %arg0, %c0_i32 : i32, i32
  }
  func.func @transform_2(%arg0: i32) -> (i32, i32) {
    %c0_i32 = arith.constant 0 : i32
    %c0_i32_0 = arith.constant 0 : i32
    %c0_i32_1 = arith.constant 0 : i32
    return %c0_i32, %c0_i32_0 : i32, i32
  }
  func.func @transform_3(%arg0: i32) -> (i32, i32) {
    %c0_i32 = arith.constant 0 : i32
    %c0_i32_0 = arith.constant 0 : i32
    %c0_i32_1 = arith.constant 0 : i32
    return %c0_i32, %c0_i32_0 : i32, i32
  }
  func.func @transform_4(%arg0: i32) -> (i32, i32) {
    %c0_i32 = arith.constant 0 : i32
    %c0_i32_0 = arith.constant 0 : i32
    return %arg0, %c0_i32 : i32, i32
  }
}

</mosaic_0001>

<llo_original>
// kernel: static_features_encoder.1
$region0: #{static_features_encoder.1}
  #allocation0 [shape = 'u32[]', space=smem, size = 0x4, offset = 0x4, fixed_abs, tag = 'smem constant byte address 0x4 - core index']
  #allocation1 [shape = 'u32[144,128]{1,0:T(1,128)}', space=vmem, size = 0x12000, scoped, tag = 'internal scratch']
  %s0 = inlined_call_operand.vmem [shape: f32[256,32], index: 0, kind: input, shape index: {}]
  %s1 = inlined_call_operand.vmem [shape: f32[256,32], index: 1, kind: input, shape index: {}]
  %s2 = inlined_call_operand.vmem [shape: bf16[32,128], index: 2, kind: input, shape index: {}]
  %s3 = inlined_call_operand.vmem [shape: f32[1,128], index: 3, kind: input, shape index: {}]
  %s4 = inlined_call_operand.hbm [shape: f32[256,128], index: 4, kind: output, shape index: {}]
  %s5 = sld [smem:[#allocation0]]
  $region49: #{static_features_encoder.1} parent=0
    _
  %s7 = ssub.s32 1, %s5
  %s8 = scalar_select 0, %s7, %s5
  $region1: #{static_features_encoder.1} parent=0
    #allocation2 [shape = 'u8[131072]{0}', space=vmem, size = 0x20000, scoped, tag = 'output window, operand 0']
    #allocation3 [shape = 's32[2]{0}', space=sflag, size = 0x8, scoped, tag = 'scoped memory for static_features_encoder.1']
    %9 = vsyncpa [#allocation3], 0
    %s10 = scalar_lea.sflag [#allocation3], 1
    %11 = vsyncpa %s10, 0
    loop: start=0, step=1, limit=4
    $region2: #{static_features_encoder.1} parent=1 // loop_pre_header
      _
    $region3: #{static_features_encoder.1} parent=1 // loop_header
      %s13 = sphi 0, %s17
      %p14 = scmp.ge.s32.totalorder %s13, 4
      %s23 = sphi 0, %s25
      %s26 = sphi 0, %s23
      %s27 = sphi 0, %s26
      %s43 = sphi 0, %s27
      %s49 = sphi 0, %s51
      %s52 = sphi 0, %s49
      %s53 = sphi 0, %s52
      %s69 = sphi 0, %s53
      %s73 = sphi 0, %s73
      %s75 = sphi 0, %s73
      %s76 = sphi 0, %s75
      %s90 = sphi 0, %s76
      %s94 = sphi 0, %s94
      %s96 = sphi 0, %s94
      %s97 = sphi 0, %s96
      %s111 = sphi 0, %s97
      %s117 = sphi 0, %s119
      %s120 = sphi 0, %s117
      %s121 = sphi 0, %s120
      %s137 = sphi 0, %s121
    $region4: #{static_features_encoder.1} parent=1 // loop_header_branch
      %16 = sbr.rel (%p14) target = $region8
    $region5: #{static_features_encoder.1} parent=1 // loop_body
      %s18 = ssub.s32 %s13, 1
      %s19 = ssub.s32 %s13, 2
      %s20 = sadd.s32 %s13, 1
      %s21 = ssub.s32 %s13, %s20
      %p22 = scmp.eq.s32.totalorder %s21, 0
      %s24 = sadd.s32 %s23, 1
      %s25 = scalar_select %p22, %s23, %s24
      %p28 = pneg %p22
      %p29 = scmp.eq.s32.totalorder %s13, 1
      %p30 = por %p28, %p29
      %p31 = scmp.ne.s32.totalorder %s23, %s26
      %p32 = scmp.eq.s32.totalorder %s13, 0
      %p33 = por %p31, %p32
      %p34 = scmp.ne.s32.totalorder %s23, %s26
      %p35 = scmp.eq.s32.totalorder %s18, 1
      %p36 = por %p34, %p35
      %p37 = scmp.ne.s32.totalorder %s26, %s27
      %p38 = scmp.eq.s32.totalorder %s18, 0
      %p39 = por %p37, %p38
      %p40 = scmp.ne.s32.totalorder %s26, %s27
      %p41 = scmp.eq.s32.totalorder %s19, 1
      %p42 = por %p40, %p41
      %p44 = scmp.ne.s32.totalorder %s27, %s43
      %p45 = scmp.eq.s32.totalorder %s19, 0
      %p46 = por %p44, %p45
      %s47 = ssub.s32 %s13, %s20
      %p48 = scmp.eq.s32.totalorder %s47, 0
      %s50 = sadd.s32 %s49, 1
      %s51 = scalar_select %p48, %s49, %s50
      %p54 = pneg %p48
      %p55 = scmp.eq.s32.totalorder %s13, 1
      %p56 = por %p54, %p55
      %p57 = scmp.ne.s32.totalorder %s49, %s52
      %p58 = scmp.eq.s32.totalorder %s13, 0
      %p59 = por %p57, %p58
      %p60 = scmp.ne.s32.totalorder %s49, %s52
      %p61 = scmp.eq.s32.totalorder %s18, 1
      %p62 = por %p60, %p61
      %p63 = scmp.ne.s32.totalorder %s52, %s53
      %p64 = scmp.eq.s32.totalorder %s18, 0
      %p65 = por %p63, %p64
      %p66 = scmp.ne.s32.totalorder %s52, %s53
      %p67 = scmp.eq.s32.totalorder %s19, 1
      %p68 = por %p66, %p67
      %p70 = scmp.ne.s32.totalorder %s53, %s69
      %p71 = scmp.eq.s32.totalorder %s19, 0
      %p72 = por %p70, %p71
      %s74 = sadd.s32 %s73, 1
      %p77 = scmp.eq.s32.totalorder %s13, 1
      %p78 = scmp.ne.s32.totalorder %s73, %s75
      %p79 = scmp.eq.s32.totalorder %s13, 0
      %p80 = por %p78, %p79
      %p81 = scmp.ne.s32.totalorder %s73, %s75
      %p82 = scmp.eq.s32.totalorder %s18, 1
      %p83 = por %p81, %p82
      %p84 = scmp.ne.s32.totalorder %s75, %s76
      %p85 = scmp.eq.s32.totalorder %s18, 0
      %p86 = por %p84, %p85
      %p87 = scmp.ne.s32.totalorder %s75, %s76
      %p88 = scmp.eq.s32.totalorder %s19, 1
      %p89 = por %p87, %p88
      %p91 = scmp.ne.s32.totalorder %s76, %s90
      %p92 = scmp.eq.s32.totalorder %s19, 0
      %p93 = por %p91, %p92
      %s95 = sadd.s32 %s94, 1
      %p98 = scmp.eq.s32.totalorder %s13, 1
      %p99 = scmp.ne.s32.totalorder %s94, %s96
      %p100 = scmp.eq.s32.totalorder %s13, 0
      %p101 = por %p99, %p100
      %p102 = scmp.ne.s32.totalorder %s94, %s96
      %p103 = scmp.eq.s32.totalorder %s18, 1
      %p104 = por %p102, %p103
      %p105 = scmp.ne.s32.totalorder %s96, %s97
      %p106 = scmp.eq.s32.totalorder %s18, 0
      %p107 = por %p105, %p106
      %p108 = scmp.ne.s32.totalorder %s96, %s97
      %p109 = scmp.eq.s32.totalorder %s19, 1
      %p110 = por %p108, %p109
      %p112 = scmp.ne.s32.totalorder %s97, %s111
      %p113 = scmp.eq.s32.totalorder %s19, 0
      %p114 = por %p112, %p113
      %s115 = ssub.s32 %s13, %s20
      %p116 = scmp.eq.s32.totalorder %s115, 0
      %s118 = sadd.s32 %s117, 1
      %s119 = scalar_select %p116, %s117, %s118
      %p122 = pneg %p116
      %p123 = scmp.eq.s32.totalorder %s13, 1
      %p124 = por %p122, %p123
      %p125 = scmp.ne.s32.totalorder %s117, %s120
      %p126 = scmp.eq.s32.totalorder %s13, 0
      %p127 = por %p125, %p126
      %p128 = scmp.ne.s32.totalorder %s117, %s120
      %p129 = scmp.eq.s32.totalorder %s18, 1
      %p130 = por %p128, %p129
      %p131 = scmp.ne.s32.totalorder %s120, %s121
      %p132 = scmp.eq.s32.totalorder %s18, 0
      %p133 = por %p131, %p132
      %p134 = scmp.ne.s32.totalorder %s120, %s121
      %p135 = scmp.eq.s32.totalorder %s19, 1
      %p136 = por %p134, %p135
      %p138 = scmp.ne.s32.totalorder %s121, %s137
      %p139 = scmp.eq.s32.totalorder %s19, 0
      %p140 = por %p138, %p139
      %p141 = scmp.le.s32.totalorder 1, %s13
      %p142 = scmp.lt.s32.totalorder %s13, 3
      %p143 = pnand %p141, %p142
      %p144 = pneg %p143
      // Predicated region
      $region9: #{static_features_encoder.1} parent=5 // pred_check
        _
      $region10: #{static_features_encoder.1} parent=5 // pred_check_branch
        %146 = sbr.rel (%p143) target = $region12
      $region11: #{static_features_encoder.1} parent=5 // pred_region
        %s147 = ssub.s32 %s13, 1
        // Predicated region
        $region13: #{static_features_encoder.1} parent=11 // pred_check
          %p148 = pneg %p86
        $region14: #{static_features_encoder.1} parent=11 // pred_check_branch
          %150 = sbr.rel (%p148) target = $region16
        $region15: #{static_features_encoder.1} parent=11 // pred_region
          _
        $region16: #{static_features_encoder.1} parent=11 // pred_fallthru
          _
        // Predicated region
        $region17: #{static_features_encoder.1} parent=11 // pred_check
          %p151 = pneg %p107
        $region18: #{static_features_encoder.1} parent=11 // pred_check_branch
          %153 = sbr.rel (%p151) target = $region20
        $region19: #{static_features_encoder.1} parent=11 // pred_region
          _
        $region20: #{static_features_encoder.1} parent=11 // pred_fallthru
          _
      $region12: #{static_features_encoder.1} parent=5 // pred_fallthru
        _
      %p154 = scmp.lt.s32.totalorder %s13, 2
      // Predicated region
      $region21: #{static_features_encoder.1} parent=5 // pred_check
        %p155 = pneg %p154
      $region22: #{static_features_encoder.1} parent=5 // pred_check_branch
        %157 = sbr.rel (%p155) target = $region24
      $region23: #{static_features_encoder.1} parent=5 // pred_region
        // Predicated region
        $region25: #{static_features_encoder.1} parent=23 // pred_check
          %p158 = pneg %p33
        $region26: #{static_features_encoder.1} parent=23 // pred_check_branch
          %160 = sbr.rel (%p158) target = $region28
        $region27: #{static_features_encoder.1} parent=23 // pred_region
          %s161 = smul.u32 16, %s13
          %p162 = scmp.lt.s32.totalorder %s161, 31
          %s163 = scalar_select %p162, %s161, 31
          %s164 = smul.addr %s163, 8
          %s165 = scalar_lea.vmem %s0, %s164
          %s166 = smul.u32 16, %s13
        $region28: #{static_features_encoder.1} parent=23 // pred_fallthru
          _
        // Predicated region
        $region29: #{static_features_encoder.1} parent=23 // pred_check
          %p167 = pneg %p59
        $region30: #{static_features_encoder.1} parent=23 // pred_check_branch
          %169 = sbr.rel (%p167) target = $region32
        $region31: #{static_features_encoder.1} parent=23 // pred_region
          %s170 = smul.u32 16, %s13
          %p171 = scmp.lt.s32.totalorder %s170, 31
          %s172 = scalar_select %p171, %s170, 31
          %s173 = smul.addr %s172, 8
          %s174 = scalar_lea.vmem %s1, %s173
          %s175 = smul.u32 16, %s13
        $region32: #{static_features_encoder.1} parent=23 // pred_fallthru
          _
      $region24: #{static_features_encoder.1} parent=5 // pred_fallthru
        _
      %p176 = scmp.le.s32.totalorder 1, %s13
      %p177 = scmp.lt.s32.totalorder %s13, 3
      %p178 = pnand %p176, %p177
      %p179 = pneg %p178
      // Predicated region
      $region33: #{static_features_encoder.1} parent=5 // pred_check
        _
      $region34: #{static_features_encoder.1} parent=5 // pred_check_branch
        %181 = sbr.rel (%p178) target = $region36
      $region35: #{static_features_encoder.1} parent=5 // pred_region
        %s182 = ssub.s32 %s13, 1
        %s183 = smul.u32 16, %s18
        %p184 = scmp.lt.s32.totalorder %s183, 31
        %s185 = scalar_select %p184, %s183, 31
        %s186 = smul.addr %s185, 8
        %s187 = scalar_lea.vmem %s0, %s186
        %p188 = pneg %p39
        %p189 = pneg %p36
        %s190 = smul.u32 16, %s18
        %p191 = scmp.lt.s32.totalorder %s190, 31
        %s192 = scalar_select %p191, %s190, 31
        %s193 = smul.addr %s192, 8
        %s194 = scalar_lea.vmem %s1, %s193
        %p195 = pneg %p65
        %p196 = pneg %p62
        %p197 = pneg %p86
        %p198 = pneg %p83
        %p199 = pneg %p107
        %p200 = pneg %p104
        %p201 = pneg %p133
        %p202 = pneg %p130
        %s203 = sand.u32 %s120, 1
        %s204 = scalar_lea.sflag [#allocation3], %s203
        %s205 = sand.u32 %s120, 1
        %s206 = smul.addr %s205, 128
        %s207 = scalar_lea.vmem [#allocation2], %s206
        %s208 = smul.u32 16, %s18
        %p209 = scmp.lt.s32.totalorder %s208, 31
        %s210 = scalar_select %p209, %s208, 31
        %s211 = smul.addr %s210, 8
        %s212 = scalar_lea.vmem %s0, %s211
        %s213 = smul.u32 16, %s18
        %s214 = smul.u32 16, %s18
        %p215 = scmp.lt.s32.totalorder %s214, 31
        %s216 = scalar_select %p215, %s214, 31
        %s217 = smul.addr %s216, 8
        %s218 = scalar_lea.vmem %s1, %s217
        %s219 = smul.u32 16, %s18
        %s220 = smul.u32 16, %s18
        %v222 = vld [vmem:[%s212] sm:$0xff]
        %v223 = vld [vmem:[%s212 + $0x8] sm:$0xff]
        %v224 = vld [vmem:[%s212 + $0x10] sm:$0xff]
        %v225 = vld [vmem:[%s212 + $0x18] sm:$0xff]
        %v226 = vld [vmem:[%s212 + $0x20] sm:$0xff]
        %v227 = vld [vmem:[%s212 + $0x28] sm:$0xff]
        %v228 = vld [vmem:[%s212 + $0x30] sm:$0xff]
        %v229 = vld [vmem:[%s212 + $0x38] sm:$0xff]
        %v230 = vld [vmem:[%s212 + $0x40] sm:$0xff]
        %v231 = vld [vmem:[%s212 + $0x48] sm:$0xff]
        %v232 = vld [vmem:[%s212 + $0x50] sm:$0xff]
        %v233 = vld [vmem:[%s212 + $0x58] sm:$0xff]
        %v234 = vld [vmem:[%s212 + $0x60] sm:$0xff]
        %v235 = vld [vmem:[%s212 + $0x68] sm:$0xff]
        %v236 = vld [vmem:[%s212 + $0x70] sm:$0xff]
        %v237 = vld [vmem:[%s212 + $0x78] sm:$0xff]
        %v238 = vld [vmem:[%s218] sm:$0xff]
        %v239 = vld [vmem:[%s218 + $0x8] sm:$0xff]
        %v240 = vld [vmem:[%s218 + $0x10] sm:$0xff]
        %v241 = vld [vmem:[%s218 + $0x18] sm:$0xff]
        %v242 = vld [vmem:[%s218 + $0x20] sm:$0xff]
        %v243 = vld [vmem:[%s218 + $0x28] sm:$0xff]
        %v244 = vld [vmem:[%s218 + $0x30] sm:$0xff]
        %v245 = vld [vmem:[%s218 + $0x38] sm:$0xff]
        %v246 = vld [vmem:[%s218 + $0x40] sm:$0xff]
        %v247 = vld [vmem:[%s218 + $0x48] sm:$0xff]
        %v248 = vld [vmem:[%s218 + $0x50] sm:$0xff]
        %v249 = vld [vmem:[%s218 + $0x58] sm:$0xff]
        %v250 = vld [vmem:[%s218 + $0x60] sm:$0xff]
        %v251 = vld [vmem:[%s218 + $0x68] sm:$0xff]
        %v252 = vld [vmem:[%s218 + $0x70] sm:$0xff]
        %v253 = vld [vmem:[%s218 + $0x78] sm:$0xff]
        %v254 = vmul.f32 %v222, %v238
        %v255 = vmul.f32 %v223, %v239
        %v256 = vmul.f32 %v224, %v240
        %v257 = vmul.f32 %v225, %v241
        %v258 = vmul.f32 %v226, %v242
        %v259 = vmul.f32 %v227, %v243
        %v260 = vmul.f32 %v228, %v244
        %v261 = vmul.f32 %v229, %v245
        %v262 = vmul.f32 %v230, %v246
        %v263 = vmul.f32 %v231, %v247
        %v264 = vmul.f32 %v232, %v248
        %v265 = vmul.f32 %v233, %v249
        %v266 = vmul.f32 %v234, %v250
        %v267 = vmul.f32 %v235, %v251
        %v268 = vmul.f32 %v236, %v252
        %v269 = vmul.f32 %v237, %v253
        %v270 = vpack.c.bf16 %v255, %v254
        %v271 = vpack.c.bf16 %v257, %v256
        %v272 = vpack.c.bf16 %v259, %v258
        %v273 = vpack.c.bf16 %v261, %v260
        %v274 = vpack.c.bf16 %v263, %v262
        %v275 = vpack.c.bf16 %v265, %v264
        %v276 = vpack.c.bf16 %v267, %v266
        %v277 = vpack.c.bf16 %v269, %v268
        %v278 = vld [vmem:[%s2] sm:$0xf]
        %v279 = vld [vmem:[%s2 + $0x4] sm:$0xf]
        %v280 = vld [vmem:[%s2 + $0x8] sm:$0xf]
        %v281 = vld [vmem:[%s2 + $0xc] sm:$0xf]
        %v286 = vunpack.c.l.b16 %v278
        %v287 = vunpack.c.l.b16 %v279
        %v288 = vunpack.c.l.b16 %v280
        %v289 = vunpack.c.l.b16 %v281
        %v290 = vpack.c.b16 %v287, %v286
        %v291 = vpack.c.b16 %v289, %v288
        %vm294 = vcmask 261120
        %v296 = vsel %vm294, %v270, 0
        %v299 = vsel %vm294, %v271, 0
        %v302 = vsel %vm294, %v272, 0
        %v305 = vsel %vm294, %v273, 0
        %v308 = vsel %vm294, %v274, 0
        %v311 = vsel %vm294, %v275, 0
        %v314 = vsel %vm294, %v276, 0
        %v317 = vsel %vm294, %v277, 0
        %319 = vmatprep.subr.bf16.mxu0 0
        %320 = vmatpush1.bf16.msra.mxu0 %v290
        %321 = vmatprep.subr.bf16.mxu0 0
        %322 = vmatpush1.bf16.msra.mxu0 %v291
        %323 = vmatprep.subr.bf16.mxu0 0
        %324 = vmatpush1.bf16.msra.mxu0 0
        %325 = vmatprep.subr.bf16.mxu0 0
        %326 = vmatpush1.bf16.msra.mxu0 0
        %327 = vmatprep.subr.bf16.mxu0 0
        %328 = vmatpush1.bf16.msra.mxu0 0
        %329 = vmatprep.subr.bf16.mxu0 0
        %330 = vmatpush1.bf16.msra.mxu0 0
        %331 = vmatprep.subr.bf16.mxu0 0
        %332 = vmatpush1.bf16.msra.mxu0 0
        %333 = vmatprep.subr.bf16.mxu0 0
        %334 = vmatpush1.bf16.msra.mxu0 0
        %335 = vmatprep.subr.bf16.mxu0 0
        %336 = vmatpush1.bf16.msra.mxu0 0
        %337 = vmatprep.subr.bf16.mxu0 0
        %338 = vmatpush1.bf16.msra.mxu0 0
        %339 = vmatprep.subr.bf16.mxu0 0
        %340 = vmatpush1.bf16.msra.mxu0 0
        %341 = vmatprep.subr.bf16.mxu0 0
        %342 = vmatpush1.bf16.msra.mxu0 0
        %343 = vmatprep.subr.bf16.mxu0 0
        %344 = vmatpush1.bf16.msra.mxu0 0
        %345 = vmatprep.subr.bf16.mxu0 0
        %346 = vmatpush1.bf16.msra.mxu0 0
        %347 = vmatprep.subr.bf16.mxu0 0
        %348 = vmatpush1.bf16.msra.mxu0 0
        %349 = vmatprep.subr.bf16.mxu0 0
        %350 = vmatpush1.bf16.msra.mxu0 0
        %351 = vmatprep.mubr.bf16.mxu0 0
        %352 = vmatmul.mubr.bf16.gmra.mrb[0].mxu0 %v296
        %v353 = vpop.f32.mrb[0].mxu0
        %v354 = vadd.f32 0.0, %v353
        %v355 = vpop.f32.mrb[0].mxu0
        %v356 = vpop.f32.mrb[0].mxu0
        %v357 = vadd.f32 0.0, %v356
        %v358 = vpop.f32.mrb[0].mxu0
        %359 = vmatprep.mubr.bf16.mxu0 0
        %360 = vmatmul.mubr.bf16.gmra.mrb[0].mxu0 %v299
        %v361 = vpop.f32.mrb[0].mxu0
        %v362 = vadd.f32 0.0, %v361
        %v363 = vpop.f32.mrb[0].mxu0
        %v364 = vpop.f32.mrb[0].mxu0
        %v365 = vadd.f32 0.0, %v364
        %v366 = vpop.f32.mrb[0].mxu0
        %367 = vmatprep.mubr.bf16.mxu0 0
        %368 = vmatmul.mubr.bf16.gmra.mrb[0].mxu0 %v302
        %v369 = vpop.f32.mrb[0].mxu0
        %v370 = vadd.f32 0.0, %v369
        %v371 = vpop.f32.mrb[0].mxu0
        %v372 = vpop.f32.mrb[0].mxu0
        %v373 = vadd.f32 0.0, %v372
        %v374 = vpop.f32.mrb[0].mxu0
        %375 = vmatprep.mubr.bf16.mxu0 0
        %376 = vmatmul.mubr.bf16.gmra.mrb[0].mxu0 %v305
        %v377 = vpop.f32.mrb[0].mxu0
        %v378 = vadd.f32 0.0, %v377
        %v379 = vpop.f32.mrb[0].mxu0
        %v380 = vpop.f32.mrb[0].mxu0
        %v381 = vadd.f32 0.0, %v380
        %v382 = vpop.f32.mrb[0].mxu0
        %383 = vmatprep.mubr.bf16.mxu0 0
        %384 = vmatmul.mubr.bf16.gmra.mrb[0].mxu0 %v308
        %v385 = vpop.f32.mrb[0].mxu0
        %v386 = vadd.f32 0.0, %v385
        %v387 = vpop.f32.mrb[0].mxu0
        %v388 = vpop.f32.mrb[0].mxu0
        %v389 = vadd.f32 0.0, %v388
        %v390 = vpop.f32.mrb[0].mxu0
        %391 = vmatprep.mubr.bf16.mxu0 0
        %392 = vmatmul.mubr.bf16.gmra.mrb[0].mxu0 %v311
        %v393 = vpop.f32.mrb[0].mxu0
        %v394 = vadd.f32 0.0, %v393
        %v395 = vpop.f32.mrb[0].mxu0
        %v396 = vpop.f32.mrb[0].mxu0
        %v397 = vadd.f32 0.0, %v396
        %v398 = vpop.f32.mrb[0].mxu0
        %399 = vmatprep.mubr.bf16.mxu0 0
        %400 = vmatmul.mubr.bf16.gmra.mrb[0].mxu0 %v314
        %v401 = vpop.f32.mrb[0].mxu0
        %v402 = vadd.f32 0.0, %v401
        %v403 = vpop.f32.mrb[0].mxu0
        %v404 = vpop.f32.mrb[0].mxu0
        %v405 = vadd.f32 0.0, %v404
        %v406 = vpop.f32.mrb[0].mxu0
        %407 = vmatprep.mubr.bf16.mxu0 0
        %408 = vmatmul.mubr.bf16.gmra.mrb[0].mxu0 %v317
        %v409 = vpop.f32.mrb[0].mxu0
        %v410 = vadd.f32 0.0, %v409
        %v411 = vpop.f32.mrb[0].mxu0
        %v412 = vpop.f32.mrb[0].mxu0
        %v413 = vadd.f32 0.0, %v412
        %v414 = vpop.f32.mrb[0].mxu0
        %415 = vdwg.mxu0
        %v416 = vmul.f32 %v354, 2.0
        %v417 = vmul.f32 %v357, 2.0
        %v418 = vmul.f32 %v362, 2.0
        %v419 = vmul.f32 %v365, 2.0
        %v420 = vmul.f32 %v370, 2.0
        %v421 = vmul.f32 %v373, 2.0
        %v422 = vmul.f32 %v378, 2.0
        %v423 = vmul.f32 %v381, 2.0
        %v424 = vmul.f32 %v386, 2.0
        %v425 = vmul.f32 %v389, 2.0
        %v426 = vmul.f32 %v394, 2.0
        %v427 = vmul.f32 %v397, 2.0
        %v428 = vmul.f32 %v402, 2.0
        %v429 = vmul.f32 %v405, 2.0
        %v430 = vmul.f32 %v410, 2.0
        %v431 = vmul.f32 %v413, 2.0
        %v432 = vld [vmem:[%s3] sm:$0x1]
        %v434 = vlaneseq
        %v435 = vshrl.u32 %v434, 7
        %v436 = vsub.s32 0, %v435
        %v437 = vrot.slane %v432, %v436
        %v439 = vadd.f32 %v416, %v437
        %v440 = vadd.f32 %v417, %v437
        %v441 = vadd.f32 %v418, %v437
        %v442 = vadd.f32 %v419, %v437
        %v443 = vadd.f32 %v420, %v437
        %v444 = vadd.f32 %v421, %v437
        %v445 = vadd.f32 %v422, %v437
        %v446 = vadd.f32 %v423, %v437
        %v447 = vadd.f32 %v424, %v437
        %v448 = vadd.f32 %v425, %v437
        %v449 = vadd.f32 %v426, %v437
        %v450 = vadd.f32 %v427, %v437
        %v451 = vadd.f32 %v428, %v437
        %v452 = vadd.f32 %v429, %v437
        %v453 = vadd.f32 %v430, %v437
        %v454 = vadd.f32 %v431, %v437
        %v455 = vmax.f32 %v439, 0.0
        %v456 = vmax.f32 %v440, 0.0
        %v457 = vmax.f32 %v441, 0.0
        %v458 = vmax.f32 %v442, 0.0
        %v459 = vmax.f32 %v443, 0.0
        %v460 = vmax.f32 %v444, 0.0
        %v461 = vmax.f32 %v445, 0.0
        %v462 = vmax.f32 %v446, 0.0
        %v463 = vmax.f32 %v447, 0.0
        %v464 = vmax.f32 %v448, 0.0
        %v465 = vmax.f32 %v449, 0.0
        %v466 = vmax.f32 %v450, 0.0
        %v467 = vmax.f32 %v451, 0.0
        %v468 = vmax.f32 %v452, 0.0
        %v469 = vmax.f32 %v453, 0.0
        %v470 = vmax.f32 %v454, 0.0
        %471 = vst [vmem:[%s207] sm:$0xff] %v455
        %472 = vst [vmem:[%s207 + $0x8] sm:$0xff] %v456
        %473 = vst [vmem:[%s207 + $0x10] sm:$0xff] %v457
        %474 = vst [vmem:[%s207 + $0x18] sm:$0xff] %v458
        %475 = vst [vmem:[%s207 + $0x20] sm:$0xff] %v459
        %476 = vst [vmem:[%s207 + $0x28] sm:$0xff] %v460
        %477 = vst [vmem:[%s207 + $0x30] sm:$0xff] %v461
        %478 = vst [vmem:[%s207 + $0x38] sm:$0xff] %v462
        %479 = vst [vmem:[%s207 + $0x40] sm:$0xff] %v463
        %480 = vst [vmem:[%s207 + $0x48] sm:$0xff] %v464
        %481 = vst [vmem:[%s207 + $0x50] sm:$0xff] %v465
        %482 = vst [vmem:[%s207 + $0x58] sm:$0xff] %v466
        %483 = vst [vmem:[%s207 + $0x60] sm:$0xff] %v467
        %484 = vst [vmem:[%s207 + $0x68] sm:$0xff] %v468
        %485 = vst [vmem:[%s207 + $0x70] sm:$0xff] %v469
        %486 = vst [vmem:[%s207 + $0x78] sm:$0xff] %v470
        %s487 = sand.u32 %s120, 1
        %s488 = scalar_lea.sflag [#allocation3], %s487
        %s489 = sand.u32 %s120, 1
        %s490 = smul.addr %s489, 128
        %s491 = scalar_lea.vmem [#allocation2], %s490
        // Predicated region
        $region37: #{static_features_encoder.1} parent=35 // pred_check
          %p492 = pneg %p130
        $region38: #{static_features_encoder.1} parent=35 // pred_check_branch
          %494 = sbr.rel (%p492) target = $region40
        $region39: #{static_features_encoder.1} parent=35 // pred_region
          %s495 = smul.u32 16, %s18
          %s497 = ssub.s32 2048, 2048
          %498 = vsyncadd %s488, %s497
          %s499 = smul.addr %s495, 128
          %s500 = scalar_lea.hbm %s4, %s499
          %s501 = sshll.u32 %s491, 4
          %s502 = int_to_ptr.vmem [resolvable:$true] %s501
          %507 = dma.vmem_to_hbm [thread:$0]  %s502, 2048, %s500, %s488, 128, 128, 8
        $region40: #{static_features_encoder.1} parent=35 // pred_fallthru
          _
      $region36: #{static_features_encoder.1} parent=5 // pred_fallthru
        _
      %p508 = scmp.le.s32.totalorder 2, %s13
      // Predicated region
      $region41: #{static_features_encoder.1} parent=5 // pred_check
        %p509 = pneg %p508
      $region42: #{static_features_encoder.1} parent=5 // pred_check_branch
        %511 = sbr.rel (%p509) target = $region44
      $region43: #{static_features_encoder.1} parent=5 // pred_region
        %s512 = ssub.s32 %s13, 2
        // Predicated region
        $region45: #{static_features_encoder.1} parent=43 // pred_check
          %p513 = pneg %p136
        $region46: #{static_features_encoder.1} parent=43 // pred_check_branch
          %515 = sbr.rel (%p513) target = $region48
        $region47: #{static_features_encoder.1} parent=43 // pred_region
          %s516 = sand.u32 %s121, 1
          %s517 = scalar_lea.sflag [#allocation3], %s516
          %s518 = sand.u32 %s121, 1
          %s519 = smul.addr %s518, 128
          %s520 = scalar_lea.vmem [#allocation2], %s519
          %521 = dma.done %s517, 2048
        $region48: #{static_features_encoder.1} parent=43 // pred_fallthru
          _
      $region44: #{static_features_encoder.1} parent=5 // pred_fallthru
        _
    $region6: #{static_features_encoder.1} parent=1 // loop_footer
      %s17 = sadd.s32 1, %s13
    $region7: #{static_features_encoder.1} parent=1 // loop_footer_branch
      %12 = sbr.rel target = $region3
    $region8: #{static_features_encoder.1} parent=1 // loop_exit
      _
    %522 = vsyncpa [#allocation3], 1
    %s523 = scalar_lea.sflag [#allocation3], 1
    %524 = vsyncpa %s523, 1

</llo_original>
